<compile_context>
chip_gen: v5e
topology: v5e:2x2
jax: 0.10.0
libtpu: 0.0.40
codegen_flags: <defaults>
</compile_context>

<pallas_src>
import functools
import numpy as np
import jax
import jax.numpy as jnp
from jax.experimental import pallas as pl
from jax.experimental.pallas import tpu as pltpu


# ----------------------------- fused Pallas kernel -----------------------------

def _rc_kernel(x_ref, w_in_ref, a_ref, bias_ref, decay_ref, mem0_ref,
               mems_ref, spikes_ref, *, thr):
    """One batch tile of the fused torchRC forward (all time steps).

    Block shapes (tb = batch tile):
      x_ref:      [tb, frames, N_in]
      w_in_ref:   [N_in, N_hid]          -- pre-scaled by (1 - alpha)
      a_ref:      [N_hid, N_hid]         -- pre-scaled by alpha
      bias_ref:   [1, N_hid]             -- pre-scaled by (1 - alpha)
      decay_ref:  [1, N_hid]
      mem0_ref:   [tb, N_hid]
      mems_ref:   [tb, (frames+1)*N_hid]   (output, lane-flattened batch-major)
      spikes_ref: [tb, (frames+1)*N_hid]   (output, lane-flattened batch-major)
    """
    tb, frames, n_in = x_ref.shape
    n_hid = a_ref.shape[0]

    # --- Input projection hoisted off the serial recurrence --------------------
    # U does not depend on the spikes, so compute it once with M = tb*frames rows
    # instead of `frames` tiny matmuls inside the loop.  alpha and bias are
    # already folded into W_in' / bias'.
    x2d = x_ref[...].reshape(tb * frames, n_in)               # leading-dim collapse
    u_all = jnp.dot(x2d, w_in_ref[...], preferred_element_type=jnp.float32)
    u_all = (u_all + bias_ref[...]).reshape(tb, frames, n_hid)  # leading-dim split

    a = a_ref[...]
    # Pre-broadcast decay once (avoids `frames` redundant broadcast ops in the
    # fully unrolled body).
    decay = jnp.broadcast_to(decay_ref[...], (tb, n_hid))

    mem = mem0_ref[...]
    spike = jnp.zeros_like(mem)
    mems_ref[:, 0:n_hid] = mem
    spikes_ref[:, 0:n_hid] = spike

    # `frames` is a small static constant -> fully unrolled straight-line body.
    # Per step: one MXU matmul (spike @ A'), tanh on the EUP, a few VPU ops and
    # two full unmasked lane-aligned [tb, N_hid] stores.
    # TODO(synk): for frames >~ 32 switch to lax.fori_loop + pl.ds stores / a
    #             time-chunked "arbitrary" grid axis.
    for t in range(frames):
        r = jnp.dot(spike, a, preferred_element_type=jnp.float32)
        y = jnp.tanh(r + u_all[:, t, :])
        mem = mem * decay - thr * spike + y
        spike = (mem > thr).astype(jnp.float32)
        lo = (t + 1) * n_hid
        mems_ref[:, lo:lo + n_hid] = mem
        spikes_ref[:, lo:lo + n_hid] = spike


def torch_rc_forward(x, params, *, alpha, thr, block_batch=None):
    """x: [batch, frames, N_in] -> (mems, spikes), each [batch, frames+1, N_hid]."""
    batch, frames, n_in = x.shape
    n_hid = params["W_in"].shape[1]

    if block_batch is None:
        block_batch = min(batch, 128)
    # TODO(synk): pad the batch when it is not a multiple of block_batch.
    assert batch % block_batch == 0, "batch must be a multiple of block_batch"
    grid = (batch // block_batch,)

    # Fold alpha and bias into the weights once (outside the kernel / off the
    # recurrence), so the per-step math is y = tanh(spike @ A' + U'[t]).
    alpha = float(alpha)
    w_in_s = ((1.0 - alpha) * params["W_in"]).astype(jnp.float32)
    a_s = (alpha * params["A"]).astype(jnp.float32)
    bias_s = ((1.0 - alpha) * params["bias"]).reshape(1, n_hid).astype(jnp.float32)
    decay = params["decay"].reshape(1, n_hid).astype(jnp.float32)
    mem0 = params["mem0"].astype(jnp.float32)

    kernel = functools.partial(_rc_kernel, thr=float(thr))

    # Outputs are lane-flattened batch-major [batch, (frames+1)*N_hid] so every
    # in-kernel store is a full unmasked (tb, 128) tile write and the final
    # reshape below is a free row-major bitcast (no transpose, no extra HBM pass).
    flat_out = jax.ShapeDtypeStruct((batch, (frames + 1) * n_hid), jnp.float32)
    out_spec = pl.BlockSpec((block_batch, (frames + 1) * n_hid), lambda b: (b, 0))

    mems_flat, spikes_flat = pl.pallas_call(
        kernel,
        grid=grid,
        in_specs=[
            pl.BlockSpec((block_batch, frames, n_in), lambda b: (b, 0, 0)),  # x
            pl.BlockSpec((n_in, n_hid), lambda b: (0, 0)),                   # W_in'
            pl.BlockSpec((n_hid, n_hid), lambda b: (0, 0)),                  # A'
            pl.BlockSpec((1, n_hid), lambda b: (0, 0)),                      # bias'
            pl.BlockSpec((1, n_hid), lambda b: (0, 0)),                      # decay
            pl.BlockSpec((block_batch, n_hid), lambda b: (b, 0)),            # mem0
        ],
        out_specs=(out_spec, out_spec),
        out_shape=(flat_out, flat_out),
        compiler_params=pltpu.CompilerParams(
            dimension_semantics=("parallel",),      # batch tiles are independent
            vmem_limit_bytes=32 * 1024 * 1024,      # explicit, with headroom
        ),
    )(x.astype(jnp.float32), w_in_s, a_s, bias_s, decay, mem0)

    mems = mems_flat.reshape(batch, frames + 1, n_hid)      # bitcast reshape
    spikes = spikes_flat.reshape(batch, frames + 1, n_hid)  # bitcast reshape
    return mems, spikes


# ------------------------------ pure-JAX reference ------------------------------

def reference_forward(x, params, *, alpha, thr):
    batch, frames, _ = x.shape
    n_hid = params["W_in"].shape[1]
    W_in, A = params["W_in"], params["A"]
    bias = params["bias"]
    decay = params["decay"].reshape(1, n_hid)

    mem = params["mem0"]
    spike = jnp.zeros((batch, n_hid), jnp.float32)
    mems, spikes = [mem], [spike]
    for t in range(frames):
        u = x[:, t, :] @ W_in
        r = spike @ A
        y = jnp.tanh(alpha * r + (1.0 - alpha) * (u + bias))
        mem = mem * decay - thr * spike + y
        spike = (mem > thr).astype(jnp.float32)
        mems.append(mem)
        spikes.append(spike)
    return jnp.stack(mems, axis=1), jnp.stack(spikes, axis=1)


# ------------------------------------ main ------------------------------------

if __name__ == "__main__":
    # Small config consistent with torchRC's forward.
    batch, frames = 16, 8         # config.frames
    N_in, N_hid = 32, 128         # N_hid = 128 -> lane-dense stores/matmuls
    Win, bias_b = 0.5, 0.2        # config.Win, config.bias
    alpha = 0.5                   # config.alpha
    thr = 0.5                     # config.LIF_thr
    mem_init = 0.1                # config.mem_init
    # config.LIF_decay falsy -> decay ~ Uniform(0.2, 1.0) of shape (1, N_hid)

    key = jax.random.PRNGKey(0)
    kx, kw, ka, kb, kd, km = jax.random.split(key, 6)
    x = jax.random.normal(kx, (batch, frames, N_in), jnp.float32)
    params = {
        "W_in": jax.random.uniform(kw, (N_in, N_hid), jnp.float32, -Win, Win),
        "A": (jax.random.uniform(ka, (N_hid, N_hid), jnp.float32, -1.0, 1.0)
              * (1.0 / np.sqrt(N_hid))),
        "bias": jax.random.uniform(kb, (N_hid,), jnp.float32, -bias_b, bias_b),
        "decay": jax.random.uniform(kd, (1, N_hid), jnp.float32, 0.2, 1.0),
        "mem0": jax.random.uniform(km, (batch, N_hid), jnp.float32,
                                   -mem_init, mem_init),
    }

    # block_batch=8 -> grid=(2,), exercising the parallel batch grid.
    mems, spikes = torch_rc_forward(x, params, alpha=alpha, thr=thr, block_batch=8)
    mems, spikes = jax.block_until_ready((mems, spikes))

    ref_m, ref_s = reference_forward(x, params, alpha=alpha, thr=thr)
    err_m = float(jnp.max(jnp.abs(mems - ref_m)))
    err_s = float(jnp.max(jnp.abs(spikes - ref_s)))
    print(f"mems {mems.shape}, spikes {spikes.shape}, "
          f"max|d_mem|={err_m:.3e}, max|d_spike|={err_s:.3e}")
    print("KERNEL_OK")
</pallas_src>

<mosaic_0001>
module attributes {stable_mosaic.version = 11 : i64} {
  func.func @_rc_kernel(%arg0: i32, %arg1: memref<8x8x32xf32, #tpu.memory_space<vmem>>, %arg2: memref<32x128xf32, #tpu.memory_space<vmem>>, %arg3: memref<128x128xf32, #tpu.memory_space<vmem>>, %arg4: memref<1x128xf32, #tpu.memory_space<vmem>>, %arg5: memref<1x128xf32, #tpu.memory_space<vmem>>, %arg6: memref<8x128xf32, #tpu.memory_space<vmem>>, %arg7: memref<8x1152xf32, #tpu.memory_space<vmem>>, %arg8: memref<8x1152xf32, #tpu.memory_space<vmem>>) attributes {dimension_semantics = [#tpu.dimension_semantics<parallel>], iteration_bounds = array<i64: 2>, scalar_prefetch = 0 : i64, scratch_operands = 0 : i64, tpu.core_type = #tpu.core_type<tc>, window_params = [{transform_indices = @transform_0, window_bounds = array<i64: 8, 8, 32>}, {pipeline_mode = #tpu.pipeline_mode<synchronous>, transform_indices = @transform_1, window_bounds = array<i64: 32, 128>}, {pipeline_mode = #tpu.pipeline_mode<synchronous>, transform_indices = @transform_2, window_bounds = array<i64: 128, 128>}, {pipeline_mode = #tpu.pipeline_mode<synchronous>, transform_indices = @transform_3, window_bounds = array<i64: 1, 128>}, {pipeline_mode = #tpu.pipeline_mode<synchronous>, transform_indices = @transform_4, window_bounds = array<i64: 1, 128>}, {transform_indices = @transform_5, window_bounds = array<i64: 8, 128>}, {transform_indices = @transform_6, window_bounds = array<i64: 8, 1152>}, {transform_indices = @transform_7, window_bounds = array<i64: 8, 1152>}]} {
    %c0 = arith.constant 0 : index
    %c0_0 = arith.constant 0 : index
    %c0_1 = arith.constant 0 : index
    %0 = vector.load %arg1[%c0, %c0_0, %c0_1] : memref<8x8x32xf32, #tpu.memory_space<vmem>>, vector<8x8x32xf32>
    %1 = vector.shape_cast %0 : vector<8x8x32xf32> to vector<64x32xf32>
    %c0_2 = arith.constant 0 : index
    %c0_3 = arith.constant 0 : index
    %2 = vector.load %arg2[%c0_2, %c0_3] : memref<32x128xf32, #tpu.memory_space<vmem>>, vector<32x128xf32>
    %cst = arith.constant dense<0.000000e+00> : vector<64x128xf32>
    %3 = tpu.matmul %1, %2, %cst {dimension_numbers = #tpu.dot_dimension_numbers<[1], [0], [0], [1], [0, 0, 1, 1], [], []>} : vector<64x32xf32>, vector<32x128xf32>, vector<64x128xf32> -> vector<64x128xf32>
    %c0_4 = arith.constant 0 : index
    %c0_5 = arith.constant 0 : index
    %4 = vector.load %arg4[%c0_4, %c0_5] : memref<1x128xf32, #tpu.memory_space<vmem>>, vector<1x128xf32>
    %5 = vector.broadcast %4 : vector<1x128xf32> to vector<64x128xf32>
    %6 = arith.addf %3, %5 : vector<64x128xf32>
    %7 = vector.shape_cast %6 : vector<64x128xf32> to vector<8x8x128xf32>
    %c0_6 = arith.constant 0 : index
    %c0_7 = arith.constant 0 : index
    %8 = vector.load %arg3[%c0_6, %c0_7] : memref<128x128xf32, #tpu.memory_space<vmem>>, vector<128x128xf32>
    %c0_8 = arith.constant 0 : index
    %c0_9 = arith.constant 0 : index
    %9 = vector.load %arg5[%c0_8, %c0_9] : memref<1x128xf32, #tpu.memory_space<vmem>>, vector<1x128xf32>
    %10 = vector.shape_cast %9 : vector<1x128xf32> to vector<1x128xf32>
    %11 = vector.broadcast %10 : vector<1x128xf32> to vector<8x128xf32>
    %c0_10 = arith.constant 0 : index
    %c0_11 = arith.constant 0 : index
    %12 = vector.load %arg6[%c0_10, %c0_11] : memref<8x128xf32, #tpu.memory_space<vmem>>, vector<8x128xf32>
    %cst_12 = arith.constant 0.000000e+00 : f32
    %13 = vector.broadcast %cst_12 : f32 to vector<8x128xf32>
    %c0_13 = arith.constant 0 : index
    %c0_14 = arith.constant 0 : index
    %14 = vector.load %arg7[%c0_13, %c0_14] : memref<8x1152xf32, #tpu.memory_space<vmem>>, vector<8x128xf32>
    tpu.vector_store %arg7[%c0_13, %c0_14], %12 {strides = array<i32>} : memref<8x1152xf32, #tpu.memory_space<vmem>>, vector<8x128xf32>,
    %c0_15 = arith.constant 0 : index
    %c0_16 = arith.constant 0 : index
    %15 = vector.load %arg8[%c0_15, %c0_16] : memref<8x1152xf32, #tpu.memory_space<vmem>>, vector<8x128xf32>
    tpu.vector_store %arg8[%c0_15, %c0_16], %13 {strides = array<i32>} : memref<8x1152xf32, #tpu.memory_space<vmem>>, vector<8x128xf32>,
    %cst_17 = arith.constant dense<0.000000e+00> : vector<8x128xf32>
    %16 = tpu.matmul %13, %8, %cst_17 {dimension_numbers = #tpu.dot_dimension_numbers<[1], [0], [0], [1], [0, 0, 1, 1], [], []>} : vector<8x128xf32>, vector<128x128xf32>, vector<8x128xf32> -> vector<8x128xf32>
    %17 = vector.extract_strided_slice %7 {offsets = [0, 0, 0], sizes = [8, 1, 128], strides = [1, 1, 1]} : vector<8x8x128xf32> to vector<8x1x128xf32>
    %18 = vector.shape_cast %17 : vector<8x1x128xf32> to vector<8x128xf32>
    %19 = arith.addf %16, %18 : vector<8x128xf32>
    %20 = math.tanh %19 : vector<8x128xf32>
    %21 = arith.mulf %12, %11 : vector<8x128xf32>
    %cst_18 = arith.constant 5.000000e-01 : f32
    %22 = vector.broadcast %cst_18 : f32 to vector<8x128xf32>
    %23 = arith.mulf %22, %13 : vector<8x128xf32>
    %24 = arith.subf %21, %23 : vector<8x128xf32>
    %25 = arith.addf %24, %20 : vector<8x128xf32>
    %cst_19 = arith.constant 5.000000e-01 : f32
    %26 = vector.broadcast %cst_19 : f32 to vector<8x128xf32>
    %27 = arith.cmpf ogt, %25, %26 : vector<8x128xf32>
    %28 = arith.extui %27 : vector<8x128xi1> to vector<8x128xi32>
    %29 = arith.sitofp %28 : vector<8x128xi32> to vector<8x128xf32>
    %c0_20 = arith.constant 0 : index
    %c128 = arith.constant 128 : index
    %30 = vector.load %arg7[%c0_20, %c128] : memref<8x1152xf32, #tpu.memory_space<vmem>>, vector<8x128xf32>
    tpu.vector_store %arg7[%c0_20, %c128], %25 {strides = array<i32>} : memref<8x1152xf32, #tpu.memory_space<vmem>>, vector<8x128xf32>,
    %c0_21 = arith.constant 0 : index
    %c128_22 = arith.constant 128 : index
    %31 = vector.load %arg8[%c0_21, %c128_22] : memref<8x1152xf32, #tpu.memory_space<vmem>>, vector<8x128xf32>
    tpu.vector_store %arg8[%c0_21, %c128_22], %29 {strides = array<i32>} : memref<8x1152xf32, #tpu.memory_space<vmem>>, vector<8x128xf32>,
    %cst_23 = arith.constant dense<0.000000e+00> : vector<8x128xf32>
    %32 = tpu.matmul %29, %8, %cst_23 {dimension_numbers = #tpu.dot_dimension_numbers<[1], [0], [0], [1], [0, 0, 1, 1], [], []>} : vector<8x128xf32>, vector<128x128xf32>, vector<8x128xf32> -> vector<8x128xf32>
    %33 = vector.extract_strided_slice %7 {offsets = [0, 1, 0], sizes = [8, 1, 128], strides = [1, 1, 1]} : vector<8x8x128xf32> to vector<8x1x128xf32>
    %34 = vector.shape_cast %33 : vector<8x1x128xf32> to vector<8x128xf32>
    %35 = arith.addf %32, %34 : vector<8x128xf32>
    %36 = math.tanh %35 : vector<8x128xf32>
    %37 = arith.mulf %25, %11 : vector<8x128xf32>
    %cst_24 = arith.constant 5.000000e-01 : f32
    %38 = vector.broadcast %cst_24 : f32 to vector<8x128xf32>
    %39 = arith.mulf %38, %29 : vector<8x128xf32>
    %40 = arith.subf %37, %39 : vector<8x128xf32>
    %41 = arith.addf %40, %36 : vector<8x128xf32>
    %cst_25 = arith.constant 5.000000e-01 : f32
    %42 = vector.broadcast %cst_25 : f32 to vector<8x128xf32>
    %43 = arith.cmpf ogt, %41, %42 : vector<8x128xf32>
    %44 = arith.extui %43 : vector<8x128xi1> to vector<8x128xi32>
    %45 = arith.sitofp %44 : vector<8x128xi32> to vector<8x128xf32>
    %c0_26 = arith.constant 0 : index
    %c256 = arith.constant 256 : index
    %46 = vector.load %arg7[%c0_26, %c256] : memref<8x1152xf32, #tpu.memory_space<vmem>>, vector<8x128xf32>
    tpu.vector_store %arg7[%c0_26, %c256], %41 {strides = array<i32>} : memref<8x1152xf32, #tpu.memory_space<vmem>>, vector<8x128xf32>,
    %c0_27 = arith.constant 0 : index
    %c256_28 = arith.constant 256 : index
    %47 = vector.load %arg8[%c0_27, %c256_28] : memref<8x1152xf32, #tpu.memory_space<vmem>>, vector<8x128xf32>
    tpu.vector_store %arg8[%c0_27, %c256_28], %45 {strides = array<i32>} : memref<8x1152xf32, #tpu.memory_space<vmem>>, vector<8x128xf32>,
    %cst_29 = arith.constant dense<0.000000e+00> : vector<8x128xf32>
    %48 = tpu.matmul %45, %8, %cst_29 {dimension_numbers = #tpu.dot_dimension_numbers<[1], [0], [0], [1], [0, 0, 1, 1], [], []>} : vector<8x128xf32>, vector<128x128xf32>, vector<8x128xf32> -> vector<8x128xf32>
    %49 = vector.extract_strided_slice %7 {offsets = [0, 2, 0], sizes = [8, 1, 128], strides = [1, 1, 1]} : vector<8x8x128xf32> to vector<8x1x128xf32>
    %50 = vector.shape_cast %49 : vector<8x1x128xf32> to vector<8x128xf32>
    %51 = arith.addf %48, %50 : vector<8x128xf32>
    %52 = math.tanh %51 : vector<8x128xf32>
    %53 = arith.mulf %41, %11 : vector<8x128xf32>
    %cst_30 = arith.constant 5.000000e-01 : f32
    %54 = vector.broadcast %cst_30 : f32 to vector<8x128xf32>
    %55 = arith.mulf %54, %45 : vector<8x128xf32>
    %56 = arith.subf %53, %55 : vector<8x128xf32>
    %57 = arith.addf %56, %52 : vector<8x128xf32>
    %cst_31 = arith.constant 5.000000e-01 : f32
    %58 = vector.broadcast %cst_31 : f32 to vector<8x128xf32>
    %59 = arith.cmpf ogt, %57, %58 : vector<8x128xf32>
    %60 = arith.extui %59 : vector<8x128xi1> to vector<8x128xi32>
    %61 = arith.sitofp %60 : vector<8x128xi32> to vector<8x128xf32>
    %c0_32 = arith.constant 0 : index
    %c384 = arith.constant 384 : index
    %62 = vector.load %arg7[%c0_32, %c384] : memref<8x1152xf32, #tpu.memory_space<vmem>>, vector<8x128xf32>
    tpu.vector_store %arg7[%c0_32, %c384], %57 {strides = array<i32>} : memref<8x1152xf32, #tpu.memory_space<vmem>>, vector<8x128xf32>,
    %c0_33 = arith.constant 0 : index
    %c384_34 = arith.constant 384 : index
    %63 = vector.load %arg8[%c0_33, %c384_34] : memref<8x1152xf32, #tpu.memory_space<vmem>>, vector<8x128xf32>
    tpu.vector_store %arg8[%c0_33, %c384_34], %61 {strides = array<i32>} : memref<8x1152xf32, #tpu.memory_space<vmem>>, vector<8x128xf32>,
    %cst_35 = arith.constant dense<0.000000e+00> : vector<8x128xf32>
    %64 = tpu.matmul %61, %8, %cst_35 {dimension_numbers = #tpu.dot_dimension_numbers<[1], [0], [0], [1], [0, 0, 1, 1], [], []>} : vector<8x128xf32>, vector<128x128xf32>, vector<8x128xf32> -> vector<8x128xf32>
    %65 = vector.extract_strided_slice %7 {offsets = [0, 3, 0], sizes = [8, 1, 128], strides = [1, 1, 1]} : vector<8x8x128xf32> to vector<8x1x128xf32>
    %66 = vector.shape_cast %65 : vector<8x1x128xf32> to vector<8x128xf32>
    %67 = arith.addf %64, %66 : vector<8x128xf32>
    %68 = math.tanh %67 : vector<8x128xf32>
    %69 = arith.mulf %57, %11 : vector<8x128xf32>
    %cst_36 = arith.constant 5.000000e-01 : f32
    %70 = vector.broadcast %cst_36 : f32 to vector<8x128xf32>
    %71 = arith.mulf %70, %61 : vector<8x128xf32>
    %72 = arith.subf %69, %71 : vector<8x128xf32>
    %73 = arith.addf %72, %68 : vector<8x128xf32>
    %cst_37 = arith.constant 5.000000e-01 : f32
    %74 = vector.broadcast %cst_37 : f32 to vector<8x128xf32>
    %75 = arith.cmpf ogt, %73, %74 : vector<8x128xf32>
    %76 = arith.extui %75 : vector<8x128xi1> to vector<8x128xi32>
    %77 = arith.sitofp %76 : vector<8x128xi32> to vector<8x128xf32>
    %c0_38 = arith.constant 0 : index
    %c512 = arith.constant 512 : index
    %78 = vector.load %arg7[%c0_38, %c512] : memref<8x1152xf32, #tpu.memory_space<vmem>>, vector<8x128xf32>
    tpu.vector_store %arg7[%c0_38, %c512], %73 {strides = array<i32>} : memref<8x1152xf32, #tpu.memory_space<vmem>>, vector<8x128xf32>,
    %c0_39 = arith.constant 0 : index
    %c512_40 = arith.constant 512 : index
    %79 = vector.load %arg8[%c0_39, %c512_40] : memref<8x1152xf32, #tpu.memory_space<vmem>>, vector<8x128xf32>
    tpu.vector_store %arg8[%c0_39, %c512_40], %77 {strides = array<i32>} : memref<8x1152xf32, #tpu.memory_space<vmem>>, vector<8x128xf32>,
    %cst_41 = arith.constant dense<0.000000e+00> : vector<8x128xf32>
    %80 = tpu.matmul %77, %8, %cst_41 {dimension_numbers = #tpu.dot_dimension_numbers<[1], [0], [0], [1], [0, 0, 1, 1], [], []>} : vector<8x128xf32>, vector<128x128xf32>, vector<8x128xf32> -> vector<8x128xf32>
    %81 = vector.extract_strided_slice %7 {offsets = [0, 4, 0], sizes = [8, 1, 128], strides = [1, 1, 1]} : vector<8x8x128xf32> to vector<8x1x128xf32>
    %82 = vector.shape_cast %81 : vector<8x1x128xf32> to vector<8x128xf32>
    %83 = arith.addf %80, %82 : vector<8x128xf32>
    %84 = math.tanh %83 : vector<8x128xf32>
    %85 = arith.mulf %73, %11 : vector<8x128xf32>
    %cst_42 = arith.constant 5.000000e-01 : f32
    %86 = vector.broadcast %cst_42 : f32 to vector<8x128xf32>
    %87 = arith.mulf %86, %77 : vector<8x128xf32>
    %88 = arith.subf %85, %87 : vector<8x128xf32>
    %89 = arith.addf %88, %84 : vector<8x128xf32>
    %cst_43 = arith.constant 5.000000e-01 : f32
    %90 = vector.broadcast %cst_43 : f32 to vector<8x128xf32>
    %91 = arith.cmpf ogt, %89, %90 : vector<8x128xf32>
    %92 = arith.extui %91 : vector<8x128xi1> to vector<8x128xi32>
    %93 = arith.sitofp %92 : vector<8x128xi32> to vector<8x128xf32>
    %c0_44 = arith.constant 0 : index
    %c640 = arith.constant 640 : index
    %94 = vector.load %arg7[%c0_44, %c640] : memref<8x1152xf32, #tpu.memory_space<vmem>>, vector<8x128xf32>
    tpu.vector_store %arg7[%c0_44, %c640], %89 {strides = array<i32>} : memref<8x1152xf32, #tpu.memory_space<vmem>>, vector<8x128xf32>,
    %c0_45 = arith.constant 0 : index
    %c640_46 = arith.constant 640 : index
    %95 = vector.load %arg8[%c0_45, %c640_46] : memref<8x1152xf32, #tpu.memory_space<vmem>>, vector<8x128xf32>
    tpu.vector_store %arg8[%c0_45, %c640_46], %93 {strides = array<i32>} : memref<8x1152xf32, #tpu.memory_space<vmem>>, vector<8x128xf32>,
    %cst_47 = arith.constant dense<0.000000e+00> : vector<8x128xf32>
    %96 = tpu.matmul %93, %8, %cst_47 {dimension_numbers = #tpu.dot_dimension_numbers<[1], [0], [0], [1], [0, 0, 1, 1], [], []>} : vector<8x128xf32>, vector<128x128xf32>, vector<8x128xf32> -> vector<8x128xf32>
    %97 = vector.extract_strided_slice %7 {offsets = [0, 5, 0], sizes = [8, 1, 128], strides = [1, 1, 1]} : vector<8x8x128xf32> to vector<8x1x128xf32>
    %98 = vector.shape_cast %97 : vector<8x1x128xf32> to vector<8x128xf32>
    %99 = arith.addf %96, %98 : vector<8x128xf32>
    %100 = math.tanh %99 : vector<8x128xf32>
    %101 = arith.mulf %89, %11 : vector<8x128xf32>
    %cst_48 = arith.constant 5.000000e-01 : f32
    %102 = vector.broadcast %cst_48 : f32 to vector<8x128xf32>
    %103 = arith.mulf %102, %93 : vector<8x128xf32>
    %104 = arith.subf %101, %103 : vector<8x128xf32>
    %105 = arith.addf %104, %100 : vector<8x128xf32>
    %cst_49 = arith.constant 5.000000e-01 : f32
    %106 = vector.broadcast %cst_49 : f32 to vector<8x128xf32>
    %107 = arith.cmpf ogt, %105, %106 : vector<8x128xf32>
    %108 = arith.extui %107 : vector<8x128xi1> to vector<8x128xi32>
    %109 = arith.sitofp %108 : vector<8x128xi32> to vector<8x128xf32>
    %c0_50 = arith.constant 0 : index
    %c768 = arith.constant 768 : index
    %110 = vector.load %arg7[%c0_50, %c768] : memref<8x1152xf32, #tpu.memory_space<vmem>>, vector<8x128xf32>
    tpu.vector_store %arg7[%c0_50, %c768], %105 {strides = array<i32>} : memref<8x1152xf32, #tpu.memory_space<vmem>>, vector<8x128xf32>,
    %c0_51 = arith.constant 0 : index
    %c768_52 = arith.constant 768 : index
    %111 = vector.load %arg8[%c0_51, %c768_52] : memref<8x1152xf32, #tpu.memory_space<vmem>>, vector<8x128xf32>
    tpu.vector_store %arg8[%c0_51, %c768_52], %109 {strides = array<i32>} : memref<8x1152xf32, #tpu.memory_space<vmem>>, vector<8x128xf32>,
    %cst_53 = arith.constant dense<0.000000e+00> : vector<8x128xf32>
    %112 = tpu.matmul %109, %8, %cst_53 {dimension_numbers = #tpu.dot_dimension_numbers<[1], [0], [0], [1], [0, 0, 1, 1], [], []>} : vector<8x128xf32>, vector<128x128xf32>, vector<8x128xf32> -> vector<8x128xf32>
    %113 = vector.extract_strided_slice %7 {offsets = [0, 6, 0], sizes = [8, 1, 128], strides = [1, 1, 1]} : vector<8x8x128xf32> to vector<8x1x128xf32>
    %114 = vector.shape_cast %113 : vector<8x1x128xf32> to vector<8x128xf32>
    %115 = arith.addf %112, %114 : vector<8x128xf32>
    %116 = math.tanh %115 : vector<8x128xf32>
    %117 = arith.mulf %105, %11 : vector<8x128xf32>
    %cst_54 = arith.constant 5.000000e-01 : f32
    %118 = vector.broadcast %cst_54 : f32 to vector<8x128xf32>
    %119 = arith.mulf %118, %109 : vector<8x128xf32>
    %120 = arith.subf %117, %119 : vector<8x128xf32>
    %121 = arith.addf %120, %116 : vector<8x128xf32>
    %cst_55 = arith.constant 5.000000e-01 : f32
    %122 = vector.broadcast %cst_55 : f32 to vector<8x128xf32>
    %123 = arith.cmpf ogt, %121, %122 : vector<8x128xf32>
    %124 = arith.extui %123 : vector<8x128xi1> to vector<8x128xi32>
    %125 = arith.sitofp %124 : vector<8x128xi32> to vector<8x128xf32>
    %c0_56 = arith.constant 0 : index
    %c896 = arith.constant 896 : index
    %126 = vector.load %arg7[%c0_56, %c896] : memref<8x1152xf32, #tpu.memory_space<vmem>>, vector<8x128xf32>
    tpu.vector_store %arg7[%c0_56, %c896], %121 {strides = array<i32>} : memref<8x1152xf32, #tpu.memory_space<vmem>>, vector<8x128xf32>,
    %c0_57 = arith.constant 0 : index
    %c896_58 = arith.constant 896 : index
    %127 = vector.load %arg8[%c0_57, %c896_58] : memref<8x1152xf32, #tpu.memory_space<vmem>>, vector<8x128xf32>
    tpu.vector_store %arg8[%c0_57, %c896_58], %125 {strides = array<i32>} : memref<8x1152xf32, #tpu.memory_space<vmem>>, vector<8x128xf32>,
    %cst_59 = arith.constant dense<0.000000e+00> : vector<8x128xf32>
    %128 = tpu.matmul %125, %8, %cst_59 {dimension_numbers = #tpu.dot_dimension_numbers<[1], [0], [0], [1], [0, 0, 1, 1], [], []>} : vector<8x128xf32>, vector<128x128xf32>, vector<8x128xf32> -> vector<8x128xf32>
    %129 = vector.extract_strided_slice %7 {offsets = [0, 7, 0], sizes = [8, 1, 128], strides = [1, 1, 1]} : vector<8x8x128xf32> to vector<8x1x128xf32>
    %130 = vector.shape_cast %129 : vector<8x1x128xf32> to vector<8x128xf32>
    %131 = arith.addf %128, %130 : vector<8x128xf32>
    %132 = math.tanh %131 : vector<8x128xf32>
    %133 = arith.mulf %121, %11 : vector<8x128xf32>
    %cst_60 = arith.constant 5.000000e-01 : f32
    %134 = vector.broadcast %cst_60 : f32 to vector<8x128xf32>
    %135 = arith.mulf %134, %125 : vector<8x128xf32>
    %136 = arith.subf %133, %135 : vector<8x128xf32>
    %137 = arith.addf %136, %132 : vector<8x128xf32>
    %cst_61 = arith.constant 5.000000e-01 : f32
    %138 = vector.broadcast %cst_61 : f32 to vector<8x128xf32>
    %139 = arith.cmpf ogt, %137, %138 : vector<8x128xf32>
    %140 = arith.extui %139 : vector<8x128xi1> to vector<8x128xi32>
    %141 = arith.sitofp %140 : vector<8x128xi32> to vector<8x128xf32>
    %c0_62 = arith.constant 0 : index
    %c1024 = arith.constant 1024 : index
    %142 = vector.load %arg7[%c0_62, %c1024] : memref<8x1152xf32, #tpu.memory_space<vmem>>, vector<8x128xf32>
    tpu.vector_store %arg7[%c0_62, %c1024], %137 {strides = array<i32>} : memref<8x1152xf32, #tpu.memory_space<vmem>>, vector<8x128xf32>,
    %c0_63 = arith.constant 0 : index
    %c1024_64 = arith.constant 1024 : index
    %143 = vector.load %arg8[%c0_63, %c1024_64] : memref<8x1152xf32, #tpu.memory_space<vmem>>, vector<8x128xf32>
    tpu.vector_store %arg8[%c0_63, %c1024_64], %141 {strides = array<i32>} : memref<8x1152xf32, #tpu.memory_space<vmem>>, vector<8x128xf32>,
    return
  }
  func.func @transform_0(%arg0: i32) -> (i32, i32, i32) {
    %c0_i32 = arith.constant 0 : i32
    %c0_i32_0 = arith.constant 0 : i32
    %c0_i32_1 = arith.constant 0 : i32
    return %arg0, %c0_i32, %c0_i32_0 : i32, i32, i32
  }
  func.func @transform_1(%arg0: i32) -> (i32, i32) {
    %c0_i32 = arith.constant 0 : i32
    %c0_i32_0 = arith.constant 0 : i32
    %c0_i32_1 = arith.constant 0 : i32
    return %c0_i32, %c0_i32_0 : i32, i32
  }
  func.func @transform_2(%arg0: i32) -> (i32, i32) {
    %c0_i32 = arith.constant 0 : i32
    %c0_i32_0 = arith.constant 0 : i32
    %c0_i32_1 = arith.constant 0 : i32
    return %c0_i32, %c0_i32_0 : i32, i32
  }
  func.func @transform_3(%arg0: i32) -> (i32, i32) {
    %c0_i32 = arith.constant 0 : i32
    %c0_i32_0 = arith.constant 0 : i32
    %c0_i32_1 = arith.constant 0 : i32
    return %c0_i32, %c0_i32_0 : i32, i32
  }
  func.func @transform_4(%arg0: i32) -> (i32, i32) {
    %c0_i32 = arith.constant 0 : i32
    %c0_i32_0 = arith.constant 0 : i32
    %c0_i32_1 = arith.constant 0 : i32
    return %c0_i32, %c0_i32_0 : i32, i32
  }
  func.func @transform_5(%arg0: i32) -> (i32, i32) {
    %c0_i32 = arith.constant 0 : i32
    %c0_i32_0 = arith.constant 0 : i32
    return %arg0, %c0_i32 : i32, i32
  }
  func.func @transform_6(%arg0: i32) -> (i32, i32) {
    %c0_i32 = arith.constant 0 : i32
    %c0_i32_0 = arith.constant 0 : i32
    return %arg0, %c0_i32 : i32, i32
  }
  func.func @transform_7(%arg0: i32) -> (i32, i32) {
    %c0_i32 = arith.constant 0 : i32
    %c0_i32_0 = arith.constant 0 : i32
    return %arg0, %c0_i32 : i32, i32
  }
}

</mosaic_0001>

<llo_original>
// kernel: tpu_custom_call.1
$region0: #{tpu_custom_call.1}
  #allocation0 [shape = 'u32[]', space=smem, size = 0x4, offset = 0x4, fixed_abs, tag = 'smem constant byte address 0x4 - core index']
  #allocation1 [shape = 'u32[72,128]{1,0:T(1,128)}', space=vmem, size = 0x9000, scoped, tag = 'internal scratch']
  %s0 = inlined_call_operand.hbm [shape: f32[16,8,32], index: 0, kind: input, shape index: {}]
  %s1 = inlined_call_operand.hbm [shape: f32[32,128], index: 1, kind: input, shape index: {}]
  %s2 = inlined_call_operand.hbm [shape: f32[128,128], index: 2, kind: input, shape index: {}]
  %s3 = inlined_call_operand.vmem [shape: f32[1,128], index: 3, kind: input, shape index: {}]
  %s4 = inlined_call_operand.vmem [shape: f32[1,128], index: 4, kind: input, shape index: {}]
  %s5 = inlined_call_operand.hbm [shape: f32[16,128], index: 5, kind: input, shape index: {}]
  %s6 = inlined_call_operand.hbm [shape: f32[16,1152], index: 6, kind: output, shape index: {0}]
  %s7 = inlined_call_operand.hbm [shape: f32[16,1152], index: 7, kind: output, shape index: {1}]
  %8 = xla_tuple %s6, %s7
  %s9 = sld [smem:[#allocation0]]
  $region81: #{tpu_custom_call.1} parent=0
    _
  %s11 = ssub.s32 1, %s9
  %s12 = scalar_select 0, %s11, %s9
  $region1: #{tpu_custom_call.1} parent=0
    #allocation2 [shape = 'u8[65536]{0}', space=vmem, size = 0x10000, scoped, tag = 'input window, operand 0']
    #allocation3 [shape = 's32[2]{0}', space=sflag, size = 0x8, scoped, tag = 'scoped memory for tpu_custom_call.1']
    #allocation4 [shape = 's32[2]{0}', space=sflag, size = 0x8, scoped, tag = 'scoped memory for tpu_custom_call.1']
    #allocation5 [shape = 'u8[16384]{0}', space=vmem, size = 0x4000, scoped, tag = 'input window, operand 1, single buffered']
    #allocation6 [shape = 's32[1]{0}', space=sflag, size = 0x4, scoped, tag = 'scoped memory for tpu_custom_call.1']
    #allocation7 [shape = 'u8[65536]{0}', space=vmem, size = 0x10000, scoped, tag = 'input window, operand 2, single buffered']
    #allocation8 [shape = 'u8[8192]{0}', space=vmem, size = 0x2000, scoped, tag = 'input window, operand 5']
    #allocation9 [shape = 's32[2]{0}', space=sflag, size = 0x8, scoped, tag = 'scoped memory for tpu_custom_call.1']
    #allocation10 [shape = 'u8[73728]{0}', space=vmem, size = 0x12000, scoped, tag = 'output window, operand 0']
    #allocation11 [shape = 'u8[73728]{0}', space=vmem, size = 0x12000, scoped, tag = 'output window, operand 1']
    #allocation12 [shape = 's32[2]{0}', space=sflag, size = 0x8, scoped, tag = 'scoped memory for tpu_custom_call.1']
    %13 = vsyncpa [#allocation3], 0
    %s14 = scalar_lea.sflag [#allocation3], 1
    %15 = vsyncpa %s14, 0
    %16 = vsyncpa [#allocation6], 0
    %17 = vsyncpa [#allocation9], 0
    %s18 = scalar_lea.sflag [#allocation9], 1
    %19 = vsyncpa %s18, 0
    %20 = vsyncpa [#allocation4], 0
    %s21 = scalar_lea.sflag [#allocation4], 1
    %22 = vsyncpa %s21, 0
    %23 = vsyncpa [#allocation12], 0
    %s24 = scalar_lea.sflag [#allocation12], 1
    %25 = vsyncpa %s24, 0
    loop: start=0, step=1, limit=4
    $region2: #{tpu_custom_call.1} parent=1 // loop_pre_header
      _
    $region3: #{tpu_custom_call.1} parent=1 // loop_header
      %s27 = sphi 0, %s31
      %p28 = scmp.ge.s32.totalorder %s27, 4
      %s37 = sphi 0, %s39
      %s40 = sphi 0, %s37
      %s41 = sphi 0, %s40
      %s57 = sphi 0, %s41
      %s61 = sphi 0, %s61
      %s63 = sphi 0, %s61
      %s64 = sphi 0, %s63
      %s78 = sphi 0, %s64
      %s82 = sphi 0, %s82
      %s84 = sphi 0, %s82
      %s85 = sphi 0, %s84
      %s99 = sphi 0, %s85
      %s103 = sphi 0, %s103
      %s105 = sphi 0, %s103
      %s106 = sphi 0, %s105
      %s120 = sphi 0, %s106
      %s124 = sphi 0, %s124
      %s126 = sphi 0, %s124
      %s127 = sphi 0, %s126
      %s141 = sphi 0, %s127
      %s147 = sphi 0, %s149
      %s150 = sphi 0, %s147
      %s151 = sphi 0, %s150
      %s167 = sphi 0, %s151
      %s173 = sphi 0, %s175
      %s176 = sphi 0, %s173
      %s177 = sphi 0, %s176
      %s193 = sphi 0, %s177
      %s199 = sphi 0, %s201
      %s202 = sphi 0, %s199
      %s203 = sphi 0, %s202
      %s219 = sphi 0, %s203
    $region4: #{tpu_custom_call.1} parent=1 // loop_header_branch
      %30 = sbr.rel (%p28) target = $region8
    $region5: #{tpu_custom_call.1} parent=1 // loop_body
      %s32 = ssub.s32 %s27, 1
      %s33 = ssub.s32 %s27, 2
      %s34 = sadd.s32 %s27, 1
      %s35 = ssub.s32 %s27, %s34
      %p36 = scmp.eq.s32.totalorder %s35, 0
      %s38 = sadd.s32 %s37, 1
      %s39 = scalar_select %p36, %s37, %s38
      %p42 = pneg %p36
      %p43 = scmp.eq.s32.totalorder %s27, 1
      %p44 = por %p42, %p43
      %p45 = scmp.ne.s32.totalorder %s37, %s40
      %p46 = scmp.eq.s32.totalorder %s27, 0
      %p47 = por %p45, %p46
      %p48 = scmp.ne.s32.totalorder %s37, %s40
      %p49 = scmp.eq.s32.totalorder %s32, 1
      %p50 = por %p48, %p49
      %p51 = scmp.ne.s32.totalorder %s40, %s41
      %p52 = scmp.eq.s32.totalorder %s32, 0
      %p53 = por %p51, %p52
      %p54 = scmp.ne.s32.totalorder %s40, %s41
      %p55 = scmp.eq.s32.totalorder %s33, 1
      %p56 = por %p54, %p55
      %p58 = scmp.ne.s32.totalorder %s41, %s57
      %p59 = scmp.eq.s32.totalorder %s33, 0
      %p60 = por %p58, %p59
      %s62 = sadd.s32 %s61, 1
      %p65 = scmp.eq.s32.totalorder %s27, 1
      %p66 = scmp.ne.s32.totalorder %s61, %s63
      %p67 = scmp.eq.s32.totalorder %s27, 0
      %p68 = por %p66, %p67
      %p69 = scmp.ne.s32.totalorder %s61, %s63
      %p70 = scmp.eq.s32.totalorder %s32, 1
      %p71 = por %p69, %p70
      %p72 = scmp.ne.s32.totalorder %s63, %s64
      %p73 = scmp.eq.s32.totalorder %s32, 0
      %p74 = por %p72, %p73
      %p75 = scmp.ne.s32.totalorder %s63, %s64
      %p76 = scmp.eq.s32.totalorder %s33, 1
      %p77 = por %p75, %p76
      %p79 = scmp.ne.s32.totalorder %s64, %s78
      %p80 = scmp.eq.s32.totalorder %s33, 0
      %p81 = por %p79, %p80
      %s83 = sadd.s32 %s82, 1
      %p86 = scmp.eq.s32.totalorder %s27, 1
      %p87 = scmp.ne.s32.totalorder %s82, %s84
      %p88 = scmp.eq.s32.totalorder %s27, 0
      %p89 = por %p87, %p88
      %p90 = scmp.ne.s32.totalorder %s82, %s84
      %p91 = scmp.eq.s32.totalorder %s32, 1
      %p92 = por %p90, %p91
      %p93 = scmp.ne.s32.totalorder %s84, %s85
      %p94 = scmp.eq.s32.totalorder %s32, 0
      %p95 = por %p93, %p94
      %p96 = scmp.ne.s32.totalorder %s84, %s85
      %p97 = scmp.eq.s32.totalorder %s33, 1
      %p98 = por %p96, %p97
      %p100 = scmp.ne.s32.totalorder %s85, %s99
      %p101 = scmp.eq.s32.totalorder %s33, 0
      %p102 = por %p100, %p101
      %s104 = sadd.s32 %s103, 1
      %p107 = scmp.eq.s32.totalorder %s27, 1
      %p108 = scmp.ne.s32.totalorder %s103, %s105
      %p109 = scmp.eq.s32.totalorder %s27, 0
      %p110 = por %p108, %p109
      %p111 = scmp.ne.s32.totalorder %s103, %s105
      %p112 = scmp.eq.s32.totalorder %s32, 1
      %p113 = por %p111, %p112
      %p114 = scmp.ne.s32.totalorder %s105, %s106
      %p115 = scmp.eq.s32.totalorder %s32, 0
      %p116 = por %p114, %p115
      %p117 = scmp.ne.s32.totalorder %s105, %s106
      %p118 = scmp.eq.s32.totalorder %s33, 1
      %p119 = por %p117, %p118
      %p121 = scmp.ne.s32.totalorder %s106, %s120
      %p122 = scmp.eq.s32.totalorder %s33, 0
      %p123 = por %p121, %p122
      %s125 = sadd.s32 %s124, 1
      %p128 = scmp.eq.s32.totalorder %s27, 1
      %p129 = scmp.ne.s32.totalorder %s124, %s126
      %p130 = scmp.eq.s32.totalorder %s27, 0
      %p131 = por %p129, %p130
      %p132 = scmp.ne.s32.totalorder %s124, %s126
      %p133 = scmp.eq.s32.totalorder %s32, 1
      %p134 = por %p132, %p133
      %p135 = scmp.ne.s32.totalorder %s126, %s127
      %p136 = scmp.eq.s32.totalorder %s32, 0
      %p137 = por %p135, %p136
      %p138 = scmp.ne.s32.totalorder %s126, %s127
      %p139 = scmp.eq.s32.totalorder %s33, 1
      %p140 = por %p138, %p139
      %p142 = scmp.ne.s32.totalorder %s127, %s141
      %p143 = scmp.eq.s32.totalorder %s33, 0
      %p144 = por %p142, %p143
      %s145 = ssub.s32 %s27, %s34
      %p146 = scmp.eq.s32.totalorder %s145, 0
      %s148 = sadd.s32 %s147, 1
      %s149 = scalar_select %p146, %s147, %s148
      %p152 = pneg %p146
      %p153 = scmp.eq.s32.totalorder %s27, 1
      %p154 = por %p152, %p153
      %p155 = scmp.ne.s32.totalorder %s147, %s150
      %p156 = scmp.eq.s32.totalorder %s27, 0
      %p157 = por %p155, %p156
      %p158 = scmp.ne.s32.totalorder %s147, %s150
      %p159 = scmp.eq.s32.totalorder %s32, 1
      %p160 = por %p158, %p159
      %p161 = scmp.ne.s32.totalorder %s150, %s151
      %p162 = scmp.eq.s32.totalorder %s32, 0
      %p163 = por %p161, %p162
      %p164 = scmp.ne.s32.totalorder %s150, %s151
      %p165 = scmp.eq.s32.totalorder %s33, 1
      %p166 = por %p164, %p165
      %p168 = scmp.ne.s32.totalorder %s151, %s167
      %p169 = scmp.eq.s32.totalorder %s33, 0
      %p170 = por %p168, %p169
      %s171 = ssub.s32 %s27, %s34
      %p172 = scmp.eq.s32.totalorder %s171, 0
      %s174 = sadd.s32 %s173, 1
      %s175 = scalar_select %p172, %s173, %s174
      %p178 = pneg %p172
      %p179 = scmp.eq.s32.totalorder %s27, 1
      %p180 = por %p178, %p179
      %p181 = scmp.ne.s32.totalorder %s173, %s176
      %p182 = scmp.eq.s32.totalorder %s27, 0
      %p183 = por %p181, %p182
      %p184 = scmp.ne.s32.totalorder %s173, %s176
      %p185 = scmp.eq.s32.totalorder %s32, 1
      %p186 = por %p184, %p185
      %p187 = scmp.ne.s32.totalorder %s176, %s177
      %p188 = scmp.eq.s32.totalorder %s32, 0
      %p189 = por %p187, %p188
      %p190 = scmp.ne.s32.totalorder %s176, %s177
      %p191 = scmp.eq.s32.totalorder %s33, 1
      %p192 = por %p190, %p191
      %p194 = scmp.ne.s32.totalorder %s177, %s193
      %p195 = scmp.eq.s32.totalorder %s33, 0
      %p196 = por %p194, %p195
      %s197 = ssub.s32 %s27, %s34
      %p198 = scmp.eq.s32.totalorder %s197, 0
      %s200 = sadd.s32 %s199, 1
      %s201 = scalar_select %p198, %s199, %s200
      %p204 = pneg %p198
      %p205 = scmp.eq.s32.totalorder %s27, 1
      %p206 = por %p204, %p205
      %p207 = scmp.ne.s32.totalorder %s199, %s202
      %p208 = scmp.eq.s32.totalorder %s27, 0
      %p209 = por %p207, %p208
      %p210 = scmp.ne.s32.totalorder %s199, %s202
      %p211 = scmp.eq.s32.totalorder %s32, 1
      %p212 = por %p210, %p211
      %p213 = scmp.ne.s32.totalorder %s202, %s203
      %p214 = scmp.eq.s32.totalorder %s32, 0
      %p215 = por %p213, %p214
      %p216 = scmp.ne.s32.totalorder %s202, %s203
      %p217 = scmp.eq.s32.totalorder %s33, 1
      %p218 = por %p216, %p217
      %p220 = scmp.ne.s32.totalorder %s203, %s219
      %p221 = scmp.eq.s32.totalorder %s33, 0
      %p222 = por %p220, %p221
      %p223 = scmp.le.s32.totalorder 1, %s27
      %p224 = scmp.lt.s32.totalorder %s27, 3
      %p225 = pnand %p223, %p224
      %p226 = pneg %p225
      // Predicated region
      $region9: #{tpu_custom_call.1} parent=5 // pred_check
        _
      $region10: #{tpu_custom_call.1} parent=5 // pred_check_branch
        %228 = sbr.rel (%p225) target = $region12
      $region11: #{tpu_custom_call.1} parent=5 // pred_region
        %s229 = ssub.s32 %s27, 1
        // Predicated region
        $region13: #{tpu_custom_call.1} parent=11 // pred_check
          %p230 = pneg %p74
        $region14: #{tpu_custom_call.1} parent=11 // pred_check_branch
          %232 = sbr.rel (%p230) target = $region16
        $region15: #{tpu_custom_call.1} parent=11 // pred_region
          %234 = vsyncadd [#allocation6], 0
          %s235 = sshll.u32 %s1, 4
          %s236 = int_to_ptr.hbm [resolvable:$true] %s235
          %s237 = sshll.u32 [#allocation5], 4
          %s238 = int_to_ptr.vmem [resolvable:$true] %s237
          %243 = dma.hbm_to_vmem [thread:$0]  %s236, 512, %s238, [#allocation6], 128, 128, 8
        $region16: #{tpu_custom_call.1} parent=11 // pred_fallthru
          _
        // Predicated region
        $region17: #{tpu_custom_call.1} parent=11 // pred_check
          %p244 = pneg %p95
        $region18: #{tpu_custom_call.1} parent=11 // pred_check_branch
          %246 = sbr.rel (%p244) target = $region20
        $region19: #{tpu_custom_call.1} parent=11 // pred_region
          %248 = vsyncadd [#allocation6], 0
          %s249 = sshll.u32 %s2, 4
          %s250 = int_to_ptr.hbm [resolvable:$true] %s249
          %s251 = sshll.u32 [#allocation7], 4
          %s252 = int_to_ptr.vmem [resolvable:$true] %s251
          %257 = dma.hbm_to_vmem [thread:$0]  %s250, 2048, %s252, [#allocation6], 128, 128, 8
        $region20: #{tpu_custom_call.1} parent=11 // pred_fallthru
          _
        // Predicated region
        $region21: #{tpu_custom_call.1} parent=11 // pred_check
          %p258 = pneg %p116
        $region22: #{tpu_custom_call.1} parent=11 // pred_check_branch
          %260 = sbr.rel (%p258) target = $region24
        $region23: #{tpu_custom_call.1} parent=11 // pred_region
          _
        $region24: #{tpu_custom_call.1} parent=11 // pred_fallthru
          _
        // Predicated region
        $region25: #{tpu_custom_call.1} parent=11 // pred_check
          %p261 = pneg %p137
        $region26: #{tpu_custom_call.1} parent=11 // pred_check_branch
          %263 = sbr.rel (%p261) target = $region28
        $region27: #{tpu_custom_call.1} parent=11 // pred_region
          _
        $region28: #{tpu_custom_call.1} parent=11 // pred_fallthru
          _
      $region12: #{tpu_custom_call.1} parent=5 // pred_fallthru
        _
      %p264 = scmp.lt.s32.totalorder %s27, 2
      // Predicated region
      $region29: #{tpu_custom_call.1} parent=5 // pred_check
        %p265 = pneg %p264
      $region30: #{tpu_custom_call.1} parent=5 // pred_check_branch
        %267 = sbr.rel (%p265) target = $region32
      $region31: #{tpu_custom_call.1} parent=5 // pred_region
        // Predicated region
        $region33: #{tpu_custom_call.1} parent=31 // pred_check
          %p268 = pneg %p47
        $region34: #{tpu_custom_call.1} parent=31 // pred_check_branch
          %270 = sbr.rel (%p268) target = $region36
        $region35: #{tpu_custom_call.1} parent=31 // pred_region
          %s271 = sand.u32 %s37, 1
          %s272 = scalar_lea.sflag [#allocation3], %s271
          %s273 = sand.u32 %s37, 1
          %s274 = smul.addr %s273, 64
          %s275 = scalar_lea.vmem [#allocation2], %s274
          %s276 = smul.u32 8, %s27
          %278 = vsyncadd %s272, 0
          %s279 = smul.addr %s276, 8
          %s280 = scalar_lea.hbm %s0, %s279
          %s281 = sshll.u32 %s280, 4
          %s282 = int_to_ptr.hbm [resolvable:$true] %s281
          %s283 = sshll.u32 %s275, 4
          %s284 = int_to_ptr.vmem [resolvable:$true] %s283
          %289 = dma.hbm_to_vmem [thread:$0]  %s282, 1024, %s284, %s272, 128, 128, 8
        $region36: #{tpu_custom_call.1} parent=31 // pred_fallthru
          _
        // Predicated region
        $region37: #{tpu_custom_call.1} parent=31 // pred_check
          %p290 = pneg %p157
        $region38: #{tpu_custom_call.1} parent=31 // pred_check_branch
          %292 = sbr.rel (%p290) target = $region40
        $region39: #{tpu_custom_call.1} parent=31 // pred_region
          %s293 = sand.u32 %s147, 1
          %s294 = scalar_lea.sflag [#allocation9], %s293
          %s295 = sand.u32 %s147, 1
          %s296 = smul.addr %s295, 8
          %s297 = scalar_lea.vmem [#allocation8], %s296
          %299 = vsyncadd %s294, 0
          %s300 = smul.addr %s27, 8
          %s301 = scalar_lea.hbm %s5, %s300
          %s303 = sshll.u32 %s301, 4
          %s304 = int_to_ptr.hbm [resolvable:$true] %s303
          %s305 = sshll.u32 %s297, 4
          %s306 = int_to_ptr.vmem [resolvable:$true] %s305
          %308 = dma.hbm_to_vmem [thread:$0]  %s304, 128, %s306, %s294
        $region40: #{tpu_custom_call.1} parent=31 // pred_fallthru
          _
      $region32: #{tpu_custom_call.1} parent=5 // pred_fallthru
        _
      %p309 = scmp.le.s32.totalorder 1, %s27
      %p310 = scmp.lt.s32.totalorder %s27, 3
      %p311 = pnand %p309, %p310
      %p312 = pneg %p311
      // Predicated region
      $region41: #{tpu_custom_call.1} parent=5 // pred_check
        _
      $region42: #{tpu_custom_call.1} parent=5 // pred_check_branch
        %314 = sbr.rel (%p311) target = $region44
      $region43: #{tpu_custom_call.1} parent=5 // pred_region
        %s315 = ssub.s32 %s27, 1
        %s316 = sand.u32 %s40, 1
        %s317 = scalar_lea.sflag [#allocation3], %s316
        %s318 = sand.u32 %s40, 1
        %s319 = smul.addr %s318, 64
        %s320 = scalar_lea.vmem [#allocation2], %s319
        // Predicated region
        $region45: #{tpu_custom_call.1} parent=43 // pred_check
          %p321 = pneg %p53
        $region46: #{tpu_custom_call.1} parent=43 // pred_check_branch
          %323 = sbr.rel (%p321) target = $region48
        $region47: #{tpu_custom_call.1} parent=43 // pred_region
          %325 = dma.done %s317, 1024
        $region48: #{tpu_custom_call.1} parent=43 // pred_fallthru
          _
        // Predicated region
        $region49: #{tpu_custom_call.1} parent=43 // pred_check
          %p326 = pneg %p74
        $region50: #{tpu_custom_call.1} parent=43 // pred_check_branch
          %328 = sbr.rel (%p326) target = $region52
        $region51: #{tpu_custom_call.1} parent=43 // pred_region
          %330 = dma.done [#allocation6], 512
        $region52: #{tpu_custom_call.1} parent=43 // pred_fallthru
          _
        // Predicated region
        $region53: #{tpu_custom_call.1} parent=43 // pred_check
          %p331 = pneg %p95
        $region54: #{tpu_custom_call.1} parent=43 // pred_check_branch
          %333 = sbr.rel (%p331) target = $region56
        $region55: #{tpu_custom_call.1} parent=43 // pred_region
          %335 = dma.done [#allocation6], 2048
        $region56: #{tpu_custom_call.1} parent=43 // pred_fallthru
          _
        %s336 = sand.u32 %s150, 1
        %s337 = scalar_lea.sflag [#allocation9], %s336
        %s338 = sand.u32 %s150, 1
        %s339 = smul.addr %s338, 8
        %s340 = scalar_lea.vmem [#allocation8], %s339
        // Predicated region
        $region57: #{tpu_custom_call.1} parent=43 // pred_check
          %p341 = pneg %p163
        $region58: #{tpu_custom_call.1} parent=43 // pred_check_branch
          %343 = sbr.rel (%p341) target = $region60
        $region59: #{tpu_custom_call.1} parent=43 // pred_region
          %345 = dma.done %s337, 128
        $region60: #{tpu_custom_call.1} parent=43 // pred_fallthru
          _
        %s346 = sand.u32 %s40, 1
        %s347 = scalar_lea.sflag [#allocation3], %s346
        %s348 = sand.u32 %s40, 1
        %s349 = smul.addr %s348, 64
        %s350 = scalar_lea.vmem [#allocation2], %s349
        %p351 = pneg %p53
        %p352 = pneg %p50
        %p353 = pneg %p74
        %p354 = pneg %p71
        %p355 = pneg %p95
        %p356 = pneg %p92
        %p357 = pneg %p116
        %p358 = pneg %p113
        %p359 = pneg %p137
        %p360 = pneg %p134
        %s361 = sand.u32 %s150, 1
        %s362 = scalar_lea.sflag [#allocation9], %s361
        %s363 = sand.u32 %s150, 1
        %s364 = smul.addr %s363, 8
        %s365 = scalar_lea.vmem [#allocation8], %s364
        %p366 = pneg %p163
        %p367 = pneg %p160
        %p368 = pneg %p189
        %p369 = pneg %p186
        %s370 = sand.u32 %s176, 1
        %s371 = scalar_lea.sflag [#allocation4], %s370
        %s372 = sand.u32 %s176, 1
        %s373 = smul.addr %s372, 72
        %s374 = scalar_lea.vmem [#allocation10], %s373
        %p375 = pneg %p215
        %p376 = pneg %p212
        %s377 = sand.u32 %s202, 1
        %s378 = scalar_lea.sflag [#allocation12], %s377
        %s379 = sand.u32 %s202, 1
        %s380 = smul.addr %s379, 72
        %s381 = scalar_lea.vmem [#allocation11], %s380
        %s382 = smul.u32 8, %s32
        %v383 = vld [vmem:[%s320] sm:$0xff]
        %v384 = vld [vmem:[%s320 + $0x8] sm:$0xff]
        %v385 = vld [vmem:[%s320 + $0x10] sm:$0xff]
        %v386 = vld [vmem:[%s320 + $0x18] sm:$0xff]
        %v387 = vld [vmem:[%s320 + $0x20] sm:$0xff]
        %v388 = vld [vmem:[%s320 + $0x28] sm:$0xff]
        %v389 = vld [vmem:[%s320 + $0x30] sm:$0xff]
        %v390 = vld [vmem:[%s320 + $0x38] sm:$0xff]
        %v391 = vld [vmem:[#allocation5] sm:$0xff]
        %v392 = vld [vmem:[#allocation5 + $0x8] sm:$0xff]
        %v393 = vld [vmem:[#allocation5 + $0x10] sm:$0xff]
        %v394 = vld [vmem:[#allocation5 + $0x18] sm:$0xff]
        %v395 = vld [vmem:[%s3] sm:$0x1]
        %v397 = vperm.slane %v395, 0
        %vm399 = vcmask 261120
        %v401 = vsel %vm399, %v383, 0
        %v404 = vsel %vm399, %v384, 0
        %v407 = vsel %vm399, %v385, 0
        %v410 = vsel %vm399, %v386, 0
        %v413 = vsel %vm399, %v387, 0
        %v416 = vsel %vm399, %v388, 0
        %v419 = vsel %vm399, %v389, 0
        %v422 = vsel %vm399, %v390, 0
        %424 = vmatpush.msra.mxu0 0.0
        %425 = vmatpush.msra.mxu0 0.0
        %426 = vmatpush.msra.mxu0 0.0
        %427 = vmatpush.msra.mxu0 0.0
        %428 = vmatpush.msra.mxu0 0.0
        %429 = vmatpush.msra.mxu0 0.0
        %430 = vmatpush.msra.mxu0 0.0
        %431 = vmatpush.msra.mxu0 0.0
        %432 = vmatpush.msra.mxu0 0.0
        %433 = vmatpush.msra.mxu0 0.0
        %434 = vmatpush.msra.mxu0 0.0
        %435 = vmatpush.msra.mxu0 0.0
        %436 = vmatpush.msra.mxu0 %v394
        %437 = vmatpush.msra.mxu0 %v393
        %438 = vmatpush.msra.mxu0 %v392
        %439 = vmatpush.msra.mxu0 %v391
        %440 = vmatmul.f32.gmra.mxu0 %v401
        %v441 = vpop.f32.mrf.mxu0
        %v442 = vadd.f32 %v397, %v441
        %443 = vmatmul.f32.gmra.mxu0 %v404
        %v444 = vpop.f32.mrf.mxu0
        %v445 = vadd.f32 %v397, %v444
        %446 = vmatmul.f32.gmra.mxu0 %v407
        %v447 = vpop.f32.mrf.mxu0
        %v448 = vadd.f32 %v397, %v447
        %449 = vmatmul.f32.gmra.mxu0 %v410
        %v450 = vpop.f32.mrf.mxu0
        %v451 = vadd.f32 %v397, %v450
        %452 = vmatmul.f32.gmra.mxu0 %v413
        %v453 = vpop.f32.mrf.mxu0
        %v454 = vadd.f32 %v397, %v453
        %455 = vmatmul.f32.gmra.mxu0 %v416
        %v456 = vpop.f32.mrf.mxu0
        %v457 = vadd.f32 %v397, %v456
        %458 = vmatmul.f32.gmra.mxu0 %v419
        %v459 = vpop.f32.mrf.mxu0
        %v460 = vadd.f32 %v397, %v459
        %461 = vmatmul.f32.gmra.mxu0 %v422
        %v462 = vpop.f32.mrf.mxu0
        %v463 = vadd.f32 %v397, %v462
        %464 = vdwg.mxu0
        %v465 = vld [vmem:[#allocation7] sm:$0xff]
        %v466 = vld [vmem:[#allocation7 + $0x8] sm:$0xff]
        %v467 = vld [vmem:[#allocation7 + $0x10] sm:$0xff]
        %v468 = vld [vmem:[#allocation7 + $0x18] sm:$0xff]
        %v469 = vld [vmem:[#allocation7 + $0x20] sm:$0xff]
        %v470 = vld [vmem:[#allocation7 + $0x28] sm:$0xff]
        %v471 = vld [vmem:[#allocation7 + $0x30] sm:$0xff]
        %v472 = vld [vmem:[#allocation7 + $0x38] sm:$0xff]
        %v473 = vld [vmem:[#allocation7 + $0x40] sm:$0xff]
        %v474 = vld [vmem:[#allocation7 + $0x48] sm:$0xff]
        %v475 = vld [vmem:[#allocation7 + $0x50] sm:$0xff]
        %v476 = vld [vmem:[#allocation7 + $0x58] sm:$0xff]
        %v477 = vld [vmem:[#allocation7 + $0x60] sm:$0xff]
        %v478 = vld [vmem:[#allocation7 + $0x68] sm:$0xff]
        %v479 = vld [vmem:[#allocation7 + $0x70] sm:$0xff]
        %v480 = vld [vmem:[#allocation7 + $0x78] sm:$0xff]
        %v481 = vld [vmem:[%s4] sm:$0x1]
        %v483 = vperm.slane %v481, 0
        %v485 = vld [vmem:[%s340] sm:$0xff]
        %486 = vst [vmem:[%s374] sm:$0xff] %v485
        %487 = vst [vmem:[%s381] sm:$0xff] 0.0
        %v496 = vrot.slane %v445, 7
        %vm497 = vcmask 1041409
        %v498 = vsel %vm497, %v496, %v442
        %v499 = vrot.slane %v448, 6
        %vm500 = vcmask 1042434
        %v501 = vsel %vm500, %v499, %v498
        %v502 = vrot.slane %v451, 5
        %vm503 = vcmask 1043459
        %v504 = vsel %vm503, %v502, %v501
        %v505 = vrot.slane %v454, 4
        %vm506 = vcmask 1044484
        %v507 = vsel %vm506, %v505, %v504
        %v508 = vrot.slane %v457, 3
        %vm509 = vcmask 1045509
        %v510 = vsel %vm509, %v508, %v507
        %v511 = vrot.slane %v460, 2
        %vm512 = vcmask 1046534
        %v513 = vsel %vm512, %v511, %v510
        %v514 = vrot.slane %v463, 1
        %vm515 = vcmask 1047559
        %v516 = vsel %vm515, %v514, %v513
        %518 = vmatpush.msra.mxu0 %v480
        %519 = vmatpush.msra.mxu0 %v479
        %520 = vmatpush.msra.mxu0 %v478
        %521 = vmatpush.msra.mxu0 %v477
        %522 = vmatpush.msra.mxu0 %v476
        %523 = vmatpush.msra.mxu0 %v475
        %524 = vmatpush.msra.mxu0 %v474
        %525 = vmatpush.msra.mxu0 %v473
        %526 = vmatpush.msra.mxu0 %v472
        %527 = vmatpush.msra.mxu0 %v471
        %528 = vmatpush.msra.mxu0 %v470
        %529 = vmatpush.msra.mxu0 %v469
        %530 = vmatpush.msra.mxu0 %v468
        %531 = vmatpush.msra.mxu0 %v467
        %532 = vmatpush.msra.mxu0 %v466
        %533 = vmatpush.msra.mxu0 %v465
        %534 = vmatmul.f32.gmra.mxu0 0.0
        %v535 = vpop.f32.mrf.mxu0
        %v536 = vadd.f32 %v516, %v535
        %537 = vdwg.mxu0
        %v538 = vtanh.pop %v536
        %v539 = vmul.f32 %v485, %v483
        %v540 = vadd.f32 %v539, %v538
        %vm541 = vcmp.gt.f32.partialorder %v540, 0.5
        %v542 = vsel %vm541, 1, 0
        %v543 = vcvt.s32.f32 %v542
        %544 = vst [vmem:[%s374 + $0x8] sm:$0xff] %v540
        %545 = vst [vmem:[%s381 + $0x8] sm:$0xff] %v543
        %v546 = vrot.slane %v442, 1
        %v547 = vsel %vm497, %v445, %v546
        %v548 = vrot.slane %v448, 7
        %v549 = vsel %vm500, %v548, %v547
        %v550 = vrot.slane %v451, 6
        %v551 = vsel %vm503, %v550, %v549
        %v552 = vrot.slane %v454, 5
        %v553 = vsel %vm506, %v552, %v551
        %v554 = vrot.slane %v457, 4
        %v555 = vsel %vm509, %v554, %v553
        %v556 = vrot.slane %v460, 3
        %v557 = vsel %vm512, %v556, %v555
        %v558 = vrot.slane %v463, 2
        %v559 = vsel %vm515, %v558, %v557
        %561 = vmatpush.msra.mxu0 %v480
        %562 = vmatpush.msra.mxu0 %v479
        %563 = vmatpush.msra.mxu0 %v478
        %564 = vmatpush.msra.mxu0 %v477
        %565 = vmatpush.msra.mxu0 %v476
        %566 = vmatpush.msra.mxu0 %v475
        %567 = vmatpush.msra.mxu0 %v474
        %568 = vmatpush.msra.mxu0 %v473
        %569 = vmatpush.msra.mxu0 %v472
        %570 = vmatpush.msra.mxu0 %v471
        %571 = vmatpush.msra.mxu0 %v470
        %572 = vmatpush.msra.mxu0 %v469
        %573 = vmatpush.msra.mxu0 %v468
        %574 = vmatpush.msra.mxu0 %v467
        %575 = vmatpush.msra.mxu0 %v466
        %576 = vmatpush.msra.mxu0 %v465
        %577 = vmatmul.f32.gmra.mxu0 %v543
        %v578 = vpop.f32.mrf.mxu0
        %v579 = vadd.f32 %v559, %v578
        %580 = vdwg.mxu0
        %v581 = vtanh.pop %v579
        %v582 = vmul.f32 %v540, %v483
        %v583 = vmul.f32 %v543, 0.5
        %v584 = vsub.f32 %v582, %v583
        %v585 = vadd.f32 %v584, %v581
        %vm586 = vcmp.gt.f32.partialorder %v585, 0.5
        %v587 = vsel %vm586, 1, 0
        %v588 = vcvt.s32.f32 %v587
        %589 = vst [vmem:[%s374 + $0x10] sm:$0xff] %v585
        %590 = vst [vmem:[%s381 + $0x10] sm:$0xff] %v588
        %v591 = vrot.slane %v442, 2
        %v592 = vrot.slane %v445, 1
        %v593 = vsel %vm497, %v592, %v591
        %v594 = vsel %vm500, %v448, %v593
        %v595 = vrot.slane %v451, 7
        %v596 = vsel %vm503, %v595, %v594
        %v597 = vrot.slane %v454, 6
        %v598 = vsel %vm506, %v597, %v596
        %v599 = vrot.slane %v457, 5
        %v600 = vsel %vm509, %v599, %v598
        %v601 = vrot.slane %v460, 4
        %v602 = vsel %vm512, %v601, %v600
        %v603 = vrot.slane %v463, 3
        %v604 = vsel %vm515, %v603, %v602
        %606 = vmatpush.msra.mxu0 %v480
        %607 = vmatpush.msra.mxu0 %v479
        %608 = vmatpush.msra.mxu0 %v478
        %609 = vmatpush.msra.mxu0 %v477
        %610 = vmatpush.msra.mxu0 %v476
        %611 = vmatpush.msra.mxu0 %v475
        %612 = vmatpush.msra.mxu0 %v474
        %613 = vmatpush.msra.mxu0 %v473
        %614 = vmatpush.msra.mxu0 %v472
        %615 = vmatpush.msra.mxu0 %v471
        %616 = vmatpush.msra.mxu0 %v470
        %617 = vmatpush.msra.mxu0 %v469
        %618 = vmatpush.msra.mxu0 %v468
        %619 = vmatpush.msra.mxu0 %v467
        %620 = vmatpush.msra.mxu0 %v466
        %621 = vmatpush.msra.mxu0 %v465
        %622 = vmatmul.f32.gmra.mxu0 %v588
        %v623 = vpop.f32.mrf.mxu0
        %v624 = vadd.f32 %v604, %v623
        %625 = vdwg.mxu0
        %v626 = vtanh.pop %v624
        %v627 = vmul.f32 %v585, %v483
        %v628 = vmul.f32 %v588, 0.5
        %v629 = vsub.f32 %v627, %v628
        %v630 = vadd.f32 %v629, %v626
        %vm631 = vcmp.gt.f32.partialorder %v630, 0.5
        %v632 = vsel %vm631, 1, 0
        %v633 = vcvt.s32.f32 %v632
        %634 = vst [vmem:[%s374 + $0x18] sm:$0xff] %v630
        %635 = vst [vmem:[%s381 + $0x18] sm:$0xff] %v633
        %v636 = vrot.slane %v442, 3
        %v637 = vrot.slane %v445, 2
        %v638 = vsel %vm497, %v637, %v636
        %v639 = vrot.slane %v448, 1
        %v640 = vsel %vm500, %v639, %v638
        %v641 = vsel %vm503, %v451, %v640
        %v642 = vrot.slane %v454, 7
        %v643 = vsel %vm506, %v642, %v641
        %v644 = vrot.slane %v457, 6
        %v645 = vsel %vm509, %v644, %v643
        %v646 = vrot.slane %v460, 5
        %v647 = vsel %vm512, %v646, %v645
        %v648 = vrot.slane %v463, 4
        %v649 = vsel %vm515, %v648, %v647
        %651 = vmatpush.msra.mxu0 %v480
        %652 = vmatpush.msra.mxu0 %v479
        %653 = vmatpush.msra.mxu0 %v478
        %654 = vmatpush.msra.mxu0 %v477
        %655 = vmatpush.msra.mxu0 %v476
        %656 = vmatpush.msra.mxu0 %v475
        %657 = vmatpush.msra.mxu0 %v474
        %658 = vmatpush.msra.mxu0 %v473
        %659 = vmatpush.msra.mxu0 %v472
        %660 = vmatpush.msra.mxu0 %v471
        %661 = vmatpush.msra.mxu0 %v470
        %662 = vmatpush.msra.mxu0 %v469
        %663 = vmatpush.msra.mxu0 %v468
        %664 = vmatpush.msra.mxu0 %v467
        %665 = vmatpush.msra.mxu0 %v466
        %666 = vmatpush.msra.mxu0 %v465
        %667 = vmatmul.f32.gmra.mxu0 %v633
        %v668 = vpop.f32.mrf.mxu0
        %v669 = vadd.f32 %v649, %v668
        %670 = vdwg.mxu0
        %v671 = vtanh.pop %v669
        %v672 = vmul.f32 %v630, %v483
        %v673 = vmul.f32 %v633, 0.5
        %v674 = vsub.f32 %v672, %v673
        %v675 = vadd.f32 %v674, %v671
        %vm676 = vcmp.gt.f32.partialorder %v675, 0.5
        %v677 = vsel %vm676, 1, 0
        %v678 = vcvt.s32.f32 %v677
        %679 = vst [vmem:[%s374 + $0x20] sm:$0xff] %v675
        %680 = vst [vmem:[%s381 + $0x20] sm:$0xff] %v678
        %v681 = vrot.slane %v442, 4
        %v682 = vrot.slane %v445, 3
        %v683 = vsel %vm497, %v682, %v681
        %v684 = vrot.slane %v448, 2
        %v685 = vsel %vm500, %v684, %v683
        %v686 = vrot.slane %v451, 1
        %v687 = vsel %vm503, %v686, %v685
        %v688 = vsel %vm506, %v454, %v687
        %v689 = vrot.slane %v457, 7
        %v690 = vsel %vm509, %v689, %v688
        %v691 = vrot.slane %v460, 6
        %v692 = vsel %vm512, %v691, %v690
        %v693 = vrot.slane %v463, 5
        %v694 = vsel %vm515, %v693, %v692
        %696 = vmatpush.msra.mxu0 %v480
        %697 = vmatpush.msra.mxu0 %v479
        %698 = vmatpush.msra.mxu0 %v478
        %699 = vmatpush.msra.mxu0 %v477
        %700 = vmatpush.msra.mxu0 %v476
        %701 = vmatpush.msra.mxu0 %v475
        %702 = vmatpush.msra.mxu0 %v474
        %703 = vmatpush.msra.mxu0 %v473
        %704 = vmatpush.msra.mxu0 %v472
        %705 = vmatpush.msra.mxu0 %v471
        %706 = vmatpush.msra.mxu0 %v470
        %707 = vmatpush.msra.mxu0 %v469
        %708 = vmatpush.msra.mxu0 %v468
        %709 = vmatpush.msra.mxu0 %v467
        %710 = vmatpush.msra.mxu0 %v466
        %711 = vmatpush.msra.mxu0 %v465
        %712 = vmatmul.f32.gmra.mxu0 %v678
        %v713 = vpop.f32.mrf.mxu0
        %v714 = vadd.f32 %v694, %v713
        %715 = vdwg.mxu0
        %v716 = vtanh.pop %v714
        %v717 = vmul.f32 %v675, %v483
        %v718 = vmul.f32 %v678, 0.5
        %v719 = vsub.f32 %v717, %v718
        %v720 = vadd.f32 %v719, %v716
        %vm721 = vcmp.gt.f32.partialorder %v720, 0.5
        %v722 = vsel %vm721, 1, 0
        %v723 = vcvt.s32.f32 %v722
        %724 = vst [vmem:[%s374 + $0x28] sm:$0xff] %v720
        %725 = vst [vmem:[%s381 + $0x28] sm:$0xff] %v723
        %v726 = vrot.slane %v442, 5
        %v727 = vrot.slane %v445, 4
        %v728 = vsel %vm497, %v727, %v726
        %v729 = vrot.slane %v448, 3
        %v730 = vsel %vm500, %v729, %v728
        %v731 = vrot.slane %v451, 2
        %v732 = vsel %vm503, %v731, %v730
        %v733 = vrot.slane %v454, 1
        %v734 = vsel %vm506, %v733, %v732
        %v735 = vsel %vm509, %v457, %v734
        %v736 = vrot.slane %v460, 7
        %v737 = vsel %vm512, %v736, %v735
        %v738 = vrot.slane %v463, 6
        %v739 = vsel %vm515, %v738, %v737
        %741 = vmatpush.msra.mxu0 %v480
        %742 = vmatpush.msra.mxu0 %v479
        %743 = vmatpush.msra.mxu0 %v478
        %744 = vmatpush.msra.mxu0 %v477
        %745 = vmatpush.msra.mxu0 %v476
        %746 = vmatpush.msra.mxu0 %v475
        %747 = vmatpush.msra.mxu0 %v474
        %748 = vmatpush.msra.mxu0 %v473
        %749 = vmatpush.msra.mxu0 %v472
        %750 = vmatpush.msra.mxu0 %v471
        %751 = vmatpush.msra.mxu0 %v470
        %752 = vmatpush.msra.mxu0 %v469
        %753 = vmatpush.msra.mxu0 %v468
        %754 = vmatpush.msra.mxu0 %v467
        %755 = vmatpush.msra.mxu0 %v466
        %756 = vmatpush.msra.mxu0 %v465
        %757 = vmatmul.f32.gmra.mxu0 %v723
        %v758 = vpop.f32.mrf.mxu0
        %v759 = vadd.f32 %v739, %v758
        %760 = vdwg.mxu0
        %v761 = vtanh.pop %v759
        %v762 = vmul.f32 %v720, %v483
        %v763 = vmul.f32 %v723, 0.5
        %v764 = vsub.f32 %v762, %v763
        %v765 = vadd.f32 %v764, %v761
        %vm766 = vcmp.gt.f32.partialorder %v765, 0.5
        %v767 = vsel %vm766, 1, 0
        %v768 = vcvt.s32.f32 %v767
        %769 = vst [vmem:[%s374 + $0x30] sm:$0xff] %v765
        %770 = vst [vmem:[%s381 + $0x30] sm:$0xff] %v768
        %v771 = vrot.slane %v442, 6
        %v772 = vrot.slane %v445, 5
        %v773 = vsel %vm497, %v772, %v771
        %v774 = vrot.slane %v448, 4
        %v775 = vsel %vm500, %v774, %v773
        %v776 = vrot.slane %v451, 3
        %v777 = vsel %vm503, %v776, %v775
        %v778 = vrot.slane %v454, 2
        %v779 = vsel %vm506, %v778, %v777
        %v780 = vrot.slane %v457, 1
        %v781 = vsel %vm509, %v780, %v779
        %v782 = vsel %vm512, %v460, %v781
        %v783 = vrot.slane %v463, 7
        %v784 = vsel %vm515, %v783, %v782
        %786 = vmatpush.msra.mxu0 %v480
        %787 = vmatpush.msra.mxu0 %v479
        %788 = vmatpush.msra.mxu0 %v478
        %789 = vmatpush.msra.mxu0 %v477
        %790 = vmatpush.msra.mxu0 %v476
        %791 = vmatpush.msra.mxu0 %v475
        %792 = vmatpush.msra.mxu0 %v474
        %793 = vmatpush.msra.mxu0 %v473
        %794 = vmatpush.msra.mxu0 %v472
        %795 = vmatpush.msra.mxu0 %v471
        %796 = vmatpush.msra.mxu0 %v470
        %797 = vmatpush.msra.mxu0 %v469
        %798 = vmatpush.msra.mxu0 %v468
        %799 = vmatpush.msra.mxu0 %v467
        %800 = vmatpush.msra.mxu0 %v466
        %801 = vmatpush.msra.mxu0 %v465
        %802 = vmatmul.f32.gmra.mxu0 %v768
        %v803 = vpop.f32.mrf.mxu0
        %v804 = vadd.f32 %v784, %v803
        %805 = vdwg.mxu0
        %v806 = vtanh.pop %v804
        %v807 = vmul.f32 %v765, %v483
        %v808 = vmul.f32 %v768, 0.5
        %v809 = vsub.f32 %v807, %v808
        %v810 = vadd.f32 %v809, %v806
        %vm811 = vcmp.gt.f32.partialorder %v810, 0.5
        %v812 = vsel %vm811, 1, 0
        %v813 = vcvt.s32.f32 %v812
        %814 = vst [vmem:[%s374 + $0x38] sm:$0xff] %v810
        %815 = vst [vmem:[%s381 + $0x38] sm:$0xff] %v813
        %v816 = vrot.slane %v442, 7
        %v817 = vrot.slane %v445, 6
        %v818 = vsel %vm497, %v817, %v816
        %v819 = vrot.slane %v448, 5
        %v820 = vsel %vm500, %v819, %v818
        %v821 = vrot.slane %v451, 4
        %v822 = vsel %vm503, %v821, %v820
        %v823 = vrot.slane %v454, 3
        %v824 = vsel %vm506, %v823, %v822
        %v825 = vrot.slane %v457, 2
        %v826 = vsel %vm509, %v825, %v824
        %v827 = vrot.slane %v460, 1
        %v828 = vsel %vm512, %v827, %v826
        %v829 = vsel %vm515, %v463, %v828
        %831 = vmatpush.msra.mxu0 %v480
        %832 = vmatpush.msra.mxu0 %v479
        %833 = vmatpush.msra.mxu0 %v478
        %834 = vmatpush.msra.mxu0 %v477
        %835 = vmatpush.msra.mxu0 %v476
        %836 = vmatpush.msra.mxu0 %v475
        %837 = vmatpush.msra.mxu0 %v474
        %838 = vmatpush.msra.mxu0 %v473
        %839 = vmatpush.msra.mxu0 %v472
        %840 = vmatpush.msra.mxu0 %v471
        %841 = vmatpush.msra.mxu0 %v470
        %842 = vmatpush.msra.mxu0 %v469
        %843 = vmatpush.msra.mxu0 %v468
        %844 = vmatpush.msra.mxu0 %v467
        %845 = vmatpush.msra.mxu0 %v466
        %846 = vmatpush.msra.mxu0 %v465
        %847 = vmatmul.f32.gmra.mxu0 %v813
        %v848 = vpop.f32.mrf.mxu0
        %v849 = vadd.f32 %v829, %v848
        %850 = vdwg.mxu0
        %v851 = vtanh.pop %v849
        %v852 = vmul.f32 %v810, %v483
        %v853 = vmul.f32 %v813, 0.5
        %v854 = vsub.f32 %v852, %v853
        %v855 = vadd.f32 %v854, %v851
        %vm856 = vcmp.gt.f32.partialorder %v855, 0.5
        %v857 = vsel %vm856, 1, 0
        %v858 = vcvt.s32.f32 %v857
        %859 = vst [vmem:[%s374 + $0x40] sm:$0xff] %v855
        %860 = vst [vmem:[%s381 + $0x40] sm:$0xff] %v858
        %s861 = sand.u32 %s176, 1
        %s862 = scalar_lea.sflag [#allocation4], %s861
        %s863 = sand.u32 %s176, 1
        %s864 = smul.addr %s863, 72
        %s865 = scalar_lea.vmem [#allocation10], %s864
        %s866 = sand.u32 %s202, 1
        %s867 = scalar_lea.sflag [#allocation12], %s866
        %s868 = sand.u32 %s202, 1
        %s869 = smul.addr %s868, 72
        %s870 = scalar_lea.vmem [#allocation11], %s869
        // Predicated region
        $region61: #{tpu_custom_call.1} parent=43 // pred_check
          %p871 = pneg %p186
        $region62: #{tpu_custom_call.1} parent=43 // pred_check_branch
          %873 = sbr.rel (%p871) target = $region64
        $region63: #{tpu_custom_call.1} parent=43 // pred_region
          %875 = vsyncadd %s862, 0
          %s876 = smul.addr %s32, 9
          %s877 = smul.addr %s876, 8
          %s878 = scalar_lea.hbm %s6, %s877
          %s880 = sshll.u32 %s865, 4
          %s881 = int_to_ptr.vmem [resolvable:$true] %s880
          %s882 = sshll.u32 %s878, 4
          %s883 = int_to_ptr.hbm [resolvable:$true] %s882
          %885 = dma.vmem_to_hbm [thread:$0]  %s881, 1152, %s883, %s862
        $region64: #{tpu_custom_call.1} parent=43 // pred_fallthru
          _
        // Predicated region
        $region65: #{tpu_custom_call.1} parent=43 // pred_check
          %p886 = pneg %p212
        $region66: #{tpu_custom_call.1} parent=43 // pred_check_branch
          %888 = sbr.rel (%p886) target = $region68
        $region67: #{tpu_custom_call.1} parent=43 // pred_region
          %890 = vsyncadd %s867, 0
          %s891 = smul.addr %s32, 9
          %s892 = smul.addr %s891, 8
          %s893 = scalar_lea.hbm %s7, %s892
          %s895 = sshll.u32 %s870, 4
          %s896 = int_to_ptr.vmem [resolvable:$true] %s895
          %s897 = sshll.u32 %s893, 4
          %s898 = int_to_ptr.hbm [resolvable:$true] %s897
          %900 = dma.vmem_to_hbm [thread:$0]  %s896, 1152, %s898, %s867
        $region68: #{tpu_custom_call.1} parent=43 // pred_fallthru
          _
      $region44: #{tpu_custom_call.1} parent=5 // pred_fallthru
        _
      %p901 = scmp.le.s32.totalorder 2, %s27
      // Predicated region
      $region69: #{tpu_custom_call.1} parent=5 // pred_check
        %p902 = pneg %p901
      $region70: #{tpu_custom_call.1} parent=5 // pred_check_branch
        %904 = sbr.rel (%p902) target = $region72
      $region71: #{tpu_custom_call.1} parent=5 // pred_region
        %s905 = ssub.s32 %s27, 2
        // Predicated region
        $region73: #{tpu_custom_call.1} parent=71 // pred_check
          %p906 = pneg %p192
        $region74: #{tpu_custom_call.1} parent=71 // pred_check_branch
          %908 = sbr.rel (%p906) target = $region76
        $region75: #{tpu_custom_call.1} parent=71 // pred_region
          %s909 = sand.u32 %s177, 1
          %s910 = scalar_lea.sflag [#allocation4], %s909
          %s911 = sand.u32 %s177, 1
          %s912 = smul.addr %s911, 72
          %s913 = scalar_lea.vmem [#allocation10], %s912
          %915 = dma.done %s910, 1152
        $region76: #{tpu_custom_call.1} parent=71 // pred_fallthru
          _
        // Predicated region
        $region77: #{tpu_custom_call.1} parent=71 // pred_check
          %p916 = pneg %p218
        $region78: #{tpu_custom_call.1} parent=71 // pred_check_branch
          %918 = sbr.rel (%p916) target = $region80
        $region79: #{tpu_custom_call.1} parent=71 // pred_region
          %s919 = sand.u32 %s203, 1
          %s920 = scalar_lea.sflag [#allocation12], %s919
          %s921 = sand.u32 %s203, 1
          %s922 = smul.addr %s921, 72
          %s923 = scalar_lea.vmem [#allocation11], %s922
          %925 = dma.done %s920, 1152
        $region80: #{tpu_custom_call.1} parent=71 // pred_fallthru
          _
      $region72: #{tpu_custom_call.1} parent=5 // pred_fallthru
        _
    $region6: #{tpu_custom_call.1} parent=1 // loop_footer
      %s31 = sadd.s32 1, %s27
    $region7: #{tpu_custom_call.1} parent=1 // loop_footer_branch
      %26 = sbr.rel target = $region3
    $region8: #{tpu_custom_call.1} parent=1 // loop_exit
      _
    %926 = vsyncpa [#allocation3], 1
    %s927 = scalar_lea.sflag [#allocation3], 1
    %928 = vsyncpa %s927, 1
    %929 = vsyncpa [#allocation6], 1
    %930 = vsyncpa [#allocation9], 1
    %s931 = scalar_lea.sflag [#allocation9], 1
    %932 = vsyncpa %s931, 1
    %933 = vsyncpa [#allocation4], 1
    %s934 = scalar_lea.sflag [#allocation4], 1
    %935 = vsyncpa %s934, 1
    %936 = vsyncpa [#allocation12], 1
    %s937 = scalar_lea.sflag [#allocation12], 1
    %938 = vsyncpa %s937, 1

</llo_original>
